<compile_context>
chip_gen: v6e
topology: v6e:2x2x1
jax: 0.10.0
libtpu: 0.0.40
codegen_flags: <defaults>
</compile_context>

<pallas_src>
import jax
import jax.numpy as jnp
from jax.experimental import pallas as pl
from jax.experimental.pallas import tpu as pltpu

LANE = 128      # vreg lane width
SUBLANE = 8     # vreg sublane count (f32)


def _pad_to(n, m):
    return ((n + m - 1) // m) * m


def _linear_kernel(x_ref, w_ref, b_ref, o_ref):
    # Hot path: one MXU matmul with f32 accumulation + VPU bias add.
    acc = jnp.dot(x_ref[...], w_ref[...], preferred_element_type=jnp.float32)
    o_ref[...] = (acc + b_ref[...]).astype(o_ref.dtype)


def mynet_forward(x, w_padded, b_padded, f_out, *, batch_tile=2048,
                  slice_output=True, xla_small_batch_threshold=0):
    """Forward pass of MyNet (fc1 only).

    x:        [B, F_in]        float32 (F_in = 94, fed unpadded)
    w_padded: [F_in, F_out_p]  float32 (PyTorch weight transposed, N padded to 128)
    b_padded: [1,    F_out_p]  float32 (bias, padded to 128 lanes)
    f_out:    true output width (85)
    returns [B, f_out] (or padded [B, F_out_p] if slice_output=False)
    """
    B, f_in = x.shape
    f_in_w, f_out_p = w_padded.shape
    assert f_in == f_in_w, "weight/input feature mismatch"

    if B <= xla_small_batch_threshold:
        # Tiny batch, no fusion: plain XLA wins over a pallas_call launch.
        out = x @ w_padded + b_padded
        return out[:, :f_out] if slice_output else out

    # Effective batch tile: never allocate more VMEM rows than the (8-aligned) batch.
    tb = min(batch_tile, _pad_to(B, SUBLANE))
    grid = (pl.cdiv(B, tb),)

    out_p = pl.pallas_call(
        _linear_kernel,
        out_shape=jax.ShapeDtypeStruct((B, f_out_p), x.dtype),
        grid=grid,
        in_specs=[
            # x: last block dim equals the full array dim (94) -> legal, no K padding.
            pl.BlockSpec((tb, f_in), lambda i: (i, 0)),
            # weight / bias stay resident across all batch tiles.
            pl.BlockSpec((f_in, f_out_p), lambda i: (0, 0)),
            pl.BlockSpec((1, f_out_p), lambda i: (0, 0)),
        ],
        out_specs=pl.BlockSpec((tb, f_out_p), lambda i: (i, 0)),
        compiler_params=pltpu.CompilerParams(
            dimension_semantics=("parallel",),
        ),
    )(x, w_padded, b_padded)

    return out_p[:, :f_out] if slice_output else out_p


def init_params(key, num_input=94, num_output=85):
    """Mirrors nn.Linear default init; returns lane-padded params (pad once, not per call)."""
    kw, kb = jax.random.split(key)
    bound = 1.0 / jnp.sqrt(jnp.float32(num_input))
    # PyTorch stores weight as [out, in]; keep the transposed [in, out] for the kernel.
    w = jax.random.uniform(kw, (num_output, num_input), jnp.float32, -bound, bound)
    b = jax.random.uniform(kb, (num_output,), jnp.float32, -bound, bound)

    f_out_p = _pad_to(num_output, LANE)   # 85 -> 128 (zero-padded lanes keep math exact)
    w_p = jnp.zeros((num_input, f_out_p), jnp.float32).at[:, :num_output].set(w.T)
    b_p = jnp.zeros((1, f_out_p), jnp.float32).at[0, :num_output].set(b)
    return w_p, b_p, num_output


if __name__ == "__main__":
    key = jax.random.PRNGKey(0)
    k_x, k_p, k_big = jax.random.split(key, 3)

    B, F_in, F_out = 8, 94, 85
    w_p, b_p, f_out = init_params(k_p, F_in, F_out)

    # --- small-batch path (single grid step, kernel exercised directly) ---
    x = jax.random.normal(k_x, (B, F_in), jnp.float32)
    out = jax.block_until_ready(mynet_forward(x, w_p, b_p, f_out))
    ref = x @ w_p[:, :F_out] + b_p[0, :F_out][None, :]
    assert out.shape == (B, F_out)
    assert jnp.allclose(out, ref, atol=1e-5, rtol=1e-5)

    # --- batched path: multiple grid steps + a partial trailing block (600 = 2*256 + 88) ---
    B_big = 600
    x_big = jax.random.normal(k_big, (B_big, F_in), jnp.float32)
    out_big = jax.block_until_ready(
        mynet_forward(x_big, w_p, b_p, f_out, batch_tile=256))
    ref_big = x_big @ w_p[:, :F_out] + b_p[0, :F_out][None, :]
    assert out_big.shape == (B_big, F_out)
    assert jnp.allclose(out_big, ref_big, atol=1e-5, rtol=1e-5)

    print("KERNEL_OK")
</pallas_src>

<mosaic_0001>
module attributes {stable_mosaic.version = 11 : i64} {
  func.func @_linear_kernel(%arg0: i32, %arg1: memref<8x94xf32, #tpu.memory_space<vmem>>, %arg2: memref<94x128xf32, #tpu.memory_space<vmem>>, %arg3: memref<1x128xf32, #tpu.memory_space<vmem>>, %arg4: memref<8x128xf32, #tpu.memory_space<vmem>>) attributes {dimension_semantics = [#tpu.dimension_semantics<parallel>], iteration_bounds = array<i64: 1>, scalar_prefetch = 0 : i64, scratch_operands = 0 : i64, tpu.core_type = #tpu.core_type<tc>, window_params = [{transform_indices = @transform_0, window_bounds = array<i64: 8, 94>}, {pipeline_mode = #tpu.pipeline_mode<synchronous>, transform_indices = @transform_1, window_bounds = array<i64: 94, 128>}, {pipeline_mode = #tpu.pipeline_mode<synchronous>, transform_indices = @transform_2, window_bounds = array<i64: 1, 128>}, {transform_indices = @transform_3, window_bounds = array<i64: 8, 128>}]} {
    %c0 = arith.constant 0 : index
    %c0_0 = arith.constant 0 : index
    %0 = vector.load %arg1[%c0, %c0_0] : memref<8x94xf32, #tpu.memory_space<vmem>>, vector<8x94xf32>
    %c0_1 = arith.constant 0 : index
    %c0_2 = arith.constant 0 : index
    %1 = vector.load %arg2[%c0_1, %c0_2] : memref<94x128xf32, #tpu.memory_space<vmem>>, vector<94x128xf32>
    %cst = arith.constant dense<0.000000e+00> : vector<8x128xf32>
    %2 = tpu.matmul %0, %1, %cst {dimension_numbers = #tpu.dot_dimension_numbers<[1], [0], [0], [1], [0, 0, 1, 1], [], []>} : vector<8x94xf32>, vector<94x128xf32>, vector<8x128xf32> -> vector<8x128xf32>
    %c0_3 = arith.constant 0 : index
    %c0_4 = arith.constant 0 : index
    %3 = vector.load %arg3[%c0_3, %c0_4] : memref<1x128xf32, #tpu.memory_space<vmem>>, vector<1x128xf32>
    %4 = vector.broadcast %3 : vector<1x128xf32> to vector<8x128xf32>
    %5 = arith.addf %2, %4 : vector<8x128xf32>
    %c0_5 = arith.constant 0 : index
    %c0_6 = arith.constant 0 : index
    %6 = vector.load %arg4[%c0_5, %c0_6] : memref<8x128xf32, #tpu.memory_space<vmem>>, vector<8x128xf32>
    tpu.vector_store %arg4[%c0_5, %c0_6], %5 {strides = array<i32>} : memref<8x128xf32, #tpu.memory_space<vmem>>, vector<8x128xf32>,
    return
  }
  func.func @transform_0(%arg0: i32) -> (i32, i32) {
    %c0_i32 = arith.constant 0 : i32
    %c0_i32_0 = arith.constant 0 : i32
    return %arg0, %c0_i32 : i32, i32
  }
  func.func @transform_1(%arg0: i32) -> (i32, i32) {
    %c0_i32 = arith.constant 0 : i32
    %c0_i32_0 = arith.constant 0 : i32
    %c0_i32_1 = arith.constant 0 : i32
    return %c0_i32, %c0_i32_0 : i32, i32
  }
  func.func @transform_2(%arg0: i32) -> (i32, i32) {
    %c0_i32 = arith.constant 0 : i32
    %c0_i32_0 = arith.constant 0 : i32
    %c0_i32_1 = arith.constant 0 : i32
    return %c0_i32, %c0_i32_0 : i32, i32
  }
  func.func @transform_3(%arg0: i32) -> (i32, i32) {
    %c0_i32 = arith.constant 0 : i32
    %c0_i32_0 = arith.constant 0 : i32
    return %arg0, %c0_i32 : i32, i32
  }
}

</mosaic_0001>

<llo_original>
// kernel: tpu_custom_call.1
$region0: #{tpu_custom_call.1}
  #allocation0 [shape = 'u32[]', space=smem, size = 0x4, offset = 0x4, fixed_abs, tag = 'smem constant byte address 0x4 - core index']
  #allocation1 [shape = 'u32[144,128]{1,0:T(1,128)}', space=vmem, size = 0x12000, scoped, tag = 'internal scratch']
  %s0 = inlined_call_operand.hbm [shape: f32[8,94], index: 0, kind: input, shape index: {}]
  %s1 = inlined_call_operand.hbm [shape: f32[94,128], index: 1, kind: input, shape index: {}]
  %s2 = inlined_call_operand.vmem [shape: f32[1,128], index: 2, kind: input, shape index: {}]
  %s3 = inlined_call_operand.hbm [shape: f32[8,128], index: 3, kind: output, shape index: {}]
  %s4 = sld [smem:[#allocation0]]
  $region30: #{tpu_custom_call.1} parent=0
    _
  %s6 = ssub.s32 1, %s4
  %s7 = scalar_select 0, %s6, %s4
  $region1: #{tpu_custom_call.1} parent=0
    #allocation2 [shape = 'u8[4096]{0}', space=vmem, size = 0x1000, scoped, tag = 'input window, operand 0, single buffered']
    #allocation3 [shape = 's32[1]{0}', space=sflag, size = 0x4, scoped, tag = 'scoped memory for tpu_custom_call.1']
    #allocation4 [shape = 's32[1]{0}', space=sflag, size = 0x4, scoped, tag = 'scoped memory for tpu_custom_call.1']
    #allocation5 [shape = 'u8[49152]{0}', space=vmem, size = 0xc000, scoped, tag = 'input window, operand 1, single buffered']
    #allocation6 [shape = 's32[1]{0}', space=sflag, size = 0x4, scoped, tag = 'scoped memory for tpu_custom_call.1']
    #allocation7 [shape = 'u8[4096]{0}', space=vmem, size = 0x1000, scoped, tag = 'output window, operand 0, single buffered']
    %8 = vsyncpa [#allocation3], 0
    %9 = vsyncpa [#allocation6], 0
    %10 = vsyncpa [#allocation4], 0
    // Predicated region
    $region2: #{tpu_custom_call.1} parent=1 // pred_check
      _
    $region3: #{tpu_custom_call.1} parent=1 // pred_check_branch
      %12 = sbr.rel (0) target = $region5
    $region4: #{tpu_custom_call.1} parent=1 // pred_region
      %s14 = ssub.s32 128, 128
      %15 = vsyncadd [#allocation3], %s14
      %s17 = sshll.u32 [#allocation2], 4
      %s18 = int_to_ptr.vmem [resolvable:$true] %s17
      %20 = dma.hbm_to_vmem [thread:$0]  %s0, 128, %s18, [#allocation3]
    $region5: #{tpu_custom_call.1} parent=1 // pred_fallthru
      _
    // Predicated region
    $region6: #{tpu_custom_call.1} parent=1 // pred_check
      _
    $region7: #{tpu_custom_call.1} parent=1 // pred_check_branch
      %22 = sbr.rel (0) target = $region9
    $region8: #{tpu_custom_call.1} parent=1 // pred_region
      %s24 = ssub.s32 1536, 1536
      %25 = vsyncadd [#allocation6], %s24
      %s26 = sshll.u32 [#allocation5], 4
      %s27 = int_to_ptr.vmem [resolvable:$true] %s26
      %32 = dma.hbm_to_vmem [thread:$0]  %s1, 1536, %s27, [#allocation6], 128, 128, 8
    $region9: #{tpu_custom_call.1} parent=1 // pred_fallthru
      _
    // Predicated region
    $region10: #{tpu_custom_call.1} parent=1 // pred_check
      _
    $region11: #{tpu_custom_call.1} parent=1 // pred_check_branch
      %34 = sbr.rel (0) target = $region13
    $region12: #{tpu_custom_call.1} parent=1 // pred_region
      _
    $region13: #{tpu_custom_call.1} parent=1 // pred_fallthru
      _
    // Predicated region
    $region14: #{tpu_custom_call.1} parent=1 // pred_check
      _
    $region15: #{tpu_custom_call.1} parent=1 // pred_check_branch
      %36 = sbr.rel (0) target = $region17
    $region16: #{tpu_custom_call.1} parent=1 // pred_region
      %37 = dma.done [#allocation3], 128
    $region17: #{tpu_custom_call.1} parent=1 // pred_fallthru
      _
    // Predicated region
    $region18: #{tpu_custom_call.1} parent=1 // pred_check
      _
    $region19: #{tpu_custom_call.1} parent=1 // pred_check_branch
      %39 = sbr.rel (0) target = $region21
    $region20: #{tpu_custom_call.1} parent=1 // pred_region
      %40 = dma.done [#allocation6], 1536
    $region21: #{tpu_custom_call.1} parent=1 // pred_fallthru
      _
    %v41 = vld [vmem:[#allocation2] sm:$0xff]
    %v42 = vld [vmem:[#allocation5] sm:$0xff]
    %v43 = vld [vmem:[#allocation5 + $0x8] sm:$0xff]
    %v44 = vld [vmem:[#allocation5 + $0x10] sm:$0xff]
    %v45 = vld [vmem:[#allocation5 + $0x18] sm:$0xff]
    %v46 = vld [vmem:[#allocation5 + $0x20] sm:$0xff]
    %v47 = vld [vmem:[#allocation5 + $0x28] sm:$0xff]
    %v48 = vld [vmem:[#allocation5 + $0x30] sm:$0xff]
    %v49 = vld [vmem:[#allocation5 + $0x38] sm:$0xff]
    %v50 = vld [vmem:[#allocation5 + $0x40] sm:$0xff]
    %v51 = vld [vmem:[#allocation5 + $0x48] sm:$0xff]
    %v52 = vld [vmem:[#allocation5 + $0x50] sm:$0xff]
    %v53 = vld [vmem:[#allocation5 + $0x58] sm:$0x3f]
    %v54 = vld [vmem:[%s2] sm:$0x1]
    %v56 = vlaneseq
    %v57 = vshrl.u32 %v56, 7
    %v58 = vsub.s32 0, %v57
    %v59 = vrot.slane %v54, %v58
    %vm61 = vcmask 769024
    %v63 = vsel %vm61, %v41, 0
    %vm65 = vcmask 1045504
    %v67 = vsel %vm65, %v53, 0
    %69 = vmatprep.subr.mxu0 0.0
    %70 = vmatpush1.msra.mxu0 0.0
    %71 = vmatprep.subr.mxu0 0.0
    %72 = vmatpush1.msra.mxu0 0.0
    %73 = vmatprep.subr.mxu0 0.0
    %74 = vmatpush1.msra.mxu0 0.0
    %75 = vmatprep.subr.mxu0 0.0
    %76 = vmatpush1.msra.mxu0 0.0
    %77 = vmatprep.subr.mxu0 0.0
    %78 = vmatpush1.msra.mxu0 %v67
    %79 = vmatprep.subr.mxu0 0.0
    %80 = vmatpush1.msra.mxu0 %v52
    %81 = vmatprep.subr.mxu0 0.0
    %82 = vmatpush1.msra.mxu0 %v51
    %83 = vmatprep.subr.mxu0 0.0
    %84 = vmatpush1.msra.mxu0 %v50
    %85 = vmatprep.subr.mxu0 0.0
    %86 = vmatpush1.msra.mxu0 %v49
    %87 = vmatprep.subr.mxu0 0.0
    %88 = vmatpush1.msra.mxu0 %v48
    %89 = vmatprep.subr.mxu0 0.0
    %90 = vmatpush1.msra.mxu0 %v47
    %91 = vmatprep.subr.mxu0 0.0
    %92 = vmatpush1.msra.mxu0 %v46
    %93 = vmatprep.subr.mxu0 0.0
    %94 = vmatpush1.msra.mxu0 %v45
    %95 = vmatprep.subr.mxu0 0.0
    %96 = vmatpush1.msra.mxu0 %v44
    %97 = vmatprep.subr.mxu0 0.0
    %98 = vmatpush1.msra.mxu0 %v43
    %99 = vmatprep.subr.mxu0 0.0
    %100 = vmatpush1.msra.mxu0 %v42
    %101 = vmatprep.subr.mxu0 0.0
    %102 = vmatpush2.msra.mxu0 0.0
    %103 = vmatprep.subr.mxu0 0.0
    %104 = vmatpush2.msra.mxu0 0.0
    %105 = vmatprep.subr.mxu0 0.0
    %106 = vmatpush2.msra.mxu0 0.0
    %107 = vmatprep.subr.mxu0 0.0
    %108 = vmatpush2.msra.mxu0 0.0
    %109 = vmatprep.subr.mxu0 0.0
    %110 = vmatpush2.msra.mxu0 0.0
    %111 = vmatprep.subr.mxu0 0.0
    %112 = vmatpush2.msra.mxu0 0.0
    %113 = vmatprep.subr.mxu0 0.0
    %114 = vmatpush2.msra.mxu0 0.0
    %115 = vmatprep.subr.mxu0 0.0
    %116 = vmatpush2.msra.mxu0 0.0
    %117 = vmatprep.subr.mxu0 0.0
    %118 = vmatpush2.msra.mxu0 0.0
    %119 = vmatprep.subr.mxu0 0.0
    %120 = vmatpush2.msra.mxu0 0.0
    %121 = vmatprep.subr.mxu0 0.0
    %122 = vmatpush2.msra.mxu0 0.0
    %123 = vmatprep.subr.mxu0 0.0
    %124 = vmatpush2.msra.mxu0 0.0
    %125 = vmatprep.subr.mxu0 0.0
    %126 = vmatpush2.msra.mxu0 0.0
    %127 = vmatprep.subr.mxu0 0.0
    %128 = vmatpush2.msra.mxu0 0.0
    %129 = vmatprep.subr.mxu0 0.0
    %130 = vmatpush2.msra.mxu0 0.0
    %131 = vmatprep.subr.mxu0 0.0
    %132 = vmatpush2.msra.mxu0 0.0
    %133 = vmatprep.mubr.f32.mxu0 0.0
    %134 = vmatmul.mubr.f32.gmra.mxu0 %v63
    %v135 = vpop.f32.mrf.mxu0
    %v136 = vadd.f32 %v59, %v135
    %v137 = vpop.f32.mrf.mxu0
    %138 = vdwg.mxu0
    %139 = vst [vmem:[#allocation7] sm:$0xff] %v136
    // Predicated region
    $region22: #{tpu_custom_call.1} parent=1 // pred_check
      _
    $region23: #{tpu_custom_call.1} parent=1 // pred_check_branch
      %141 = sbr.rel (0) target = $region25
    $region24: #{tpu_custom_call.1} parent=1 // pred_region
      %s143 = ssub.s32 128, 128
      %144 = vsyncadd [#allocation4], %s143
      %s146 = sshll.u32 [#allocation7], 4
      %s147 = int_to_ptr.vmem [resolvable:$true] %s146
      %149 = dma.vmem_to_hbm [thread:$0]  %s147, 128, %s3, [#allocation4]
    $region25: #{tpu_custom_call.1} parent=1 // pred_fallthru
      _
    // Predicated region
    $region26: #{tpu_custom_call.1} parent=1 // pred_check
      _
    $region27: #{tpu_custom_call.1} parent=1 // pred_check_branch
      %151 = sbr.rel (0) target = $region29
    $region28: #{tpu_custom_call.1} parent=1 // pred_region
      %152 = dma.done [#allocation4], 128
    $region29: #{tpu_custom_call.1} parent=1 // pred_fallthru
      _
    %153 = vsyncpa [#allocation3], 1
    %154 = vsyncpa [#allocation6], 1
    %155 = vsyncpa [#allocation4], 1

</llo_original>
